<compile_context>
chip_gen: v7x
topology: tpu7x:2x2x1
jax: 0.10.0
libtpu: 0.0.40
codegen_flags: <defaults>
</compile_context>

<pallas_src>
import functools
import math

import jax
import jax.numpy as jnp
from jax.experimental import pallas as pl
from jax.experimental.pallas import tpu as pltpu


def _round_up(x, m):
    return ((x + m - 1) // m) * m


_ACT = {
    "silu": lambda g: g * jax.nn.sigmoid(g),
    "swish": lambda g: g * jax.nn.sigmoid(g),
    "gelu": jax.nn.gelu,
    "gelu_fast": jax.nn.gelu,
    "relu": lambda g: jnp.maximum(g, 0.0),
}


def _vmem_capacity_bytes():
    """Physical per-TensorCore VMEM; conservative fallback if unavailable."""
    try:
        info = pltpu.get_tpu_info()
        cap = int(getattr(info, "vmem_capacity_bytes", 0))
        if cap > 0:
            return cap
    except Exception:
        pass
    return 64 << 20  # v7x per-TensorCore VMEM (smallest of the targets)


def _solve_tiles(M, H, F, in_db, out_db, token_tile, f_tile, budget):
    """Pick (tm, tf) so the double-buffered working set fits the VMEM budget."""
    sublane = {4: 8, 2: 16, 1: 32}.get(in_db, 8)
    lane = 128

    # --- F tile: prefer f_tile; shrink (in lane steps) until the
    #     double-buffered weight stream uses at most ~60% of the budget.
    tf = max(lane, min(_round_up(f_tile, lane), _round_up(F, lane)))

    def w_stream(tf_):
        # wcat (H, 2*tf) + w2 (tf, H), each double-buffered.
        return 2 * 3 * H * tf_ * in_db

    while tf > lane and w_stream(tf) > 0.6 * budget:
        tf -= lane
    F_pad = _round_up(F, tf)
    n_f = F_pad // tf

    # --- Token tile: fill the remaining budget.
    per_row = (2 * H * in_db          # x tile (double-buffered)
               + 2 * H * out_db       # output tile (double-buffered)
               + (4 * H if n_f > 1 else 0)   # f32 accumulator scratch
               + 2 * tf * 4)          # f32 fused-projection temporary
    fixed = w_stream(tf) + 2 * 4 * (2 * tf + H)   # weights + biases
    avail = max(budget - fixed, per_row * sublane)
    tm_cap = max(int(avail // per_row), sublane)
    tm = max(sublane, min(token_tile, tm_cap))

    if M <= tm:
        # Small / decode M: single token tile with minimal padding.
        tm = _round_up(M, sublane)
    elif tm >= 256:
        tm = (tm // 256) * 256       # full MXU passes on v6e/v7x (2x256x256)
    elif tm >= 128:
        tm = (tm // 128) * 128       # full MXU passes on v5e (4x128x128)
    else:
        tm = max((tm // sublane) * sublane, sublane)

    M_pad = _round_up(M, tm)
    return tm, tf, n_f, M_pad, F_pad


def _gated_ffn_kernel(x_ref, wcat_ref, bcat_ref, w2_ref, b2_ref, o_ref,
                      acc_ref=None, *, tf, n_f, act):
    """One (token-tile, F-tile) step of the fused gated FFN.

    x_ref    : (tm, H)    token tile (resident across the F axis)
    wcat_ref : (H, 2*tf)  interleaved [Wg_f | W1_f] weight slice
    bcat_ref : (1, 2*tf)  interleaved [bg_f | b1_f] bias slice (f32)
    w2_ref   : (tf, H)    down-projection weight slice
    b2_ref   : (1, H)     down-projection bias (f32)
    o_ref    : (tm, H)    output tile (written on the last F step)
    acc_ref  : (tm, H)    f32 accumulator scratch (absent when n_f == 1)
    """
    x = x_ref[...]
    # Single MXU pass over x for both the gate and the up projection.
    proj = jnp.dot(x, wcat_ref[...], preferred_element_type=jnp.float32)
    proj = proj + bcat_ref[...]
    gate = proj[:, :tf]
    up = proj[:, tf:]
    inter = act(gate) * up
    # Downcast the intermediate to the weight dtype for MXU throughput; the
    # accumulation stays in f32.
    partial = jnp.dot(inter.astype(w2_ref.dtype), w2_ref[...],
                      preferred_element_type=jnp.float32)

    if n_f == 1:
        # Single F step: no accumulator scratch needed.
        o_ref[...] = (partial + b2_ref[...]).astype(o_ref.dtype)
    else:
        f = pl.program_id(1)

        @pl.when(f == 0)
        def _():
            acc_ref[...] = jnp.zeros_like(acc_ref)

        acc_ref[...] += partial

        @pl.when(f == n_f - 1)
        def _():
            o_ref[...] = (acc_ref[...] + b2_ref[...]).astype(o_ref.dtype)


@functools.partial(
    jax.jit,
    static_argnames=("token_tile", "f_tile", "use_bf16_matmul", "hidden_act"))
def parallel_gated_feed_forward(hidden_states, wg, bg, w1, b1, w2, b2,
                                token_tile=1024, f_tile=512,
                                use_bf16_matmul=False, hidden_act="silu"):
    """hidden_states: [..., H] -> [..., H] gated FFN forward."""
    lead = hidden_states.shape[:-1]
    H = hidden_states.shape[-1]
    F = wg.shape[1]
    M = math.prod(lead) if lead else 1
    out_dtype = hidden_states.dtype
    act = _ACT[hidden_act]

    # Optional mixed-precision MXU path for f32 models (flag to model owner).
    if use_bf16_matmul and out_dtype == jnp.float32:
        compute_dtype = jnp.bfloat16
    else:
        compute_dtype = out_dtype
    in_db = jnp.dtype(compute_dtype).itemsize
    out_db = jnp.dtype(out_dtype).itemsize

    cap = _vmem_capacity_bytes()
    budget = int(cap * 0.70)                 # tile-solve budget (temp headroom)
    vmem_limit = int(cap * 0.92)             # never exceed the chip's VMEM
    tm, tf, n_f, M_pad, F_pad = _solve_tiles(
        M, H, F, in_db, out_db, token_tile, f_tile, budget)

    # ---- Operand prep (token padding, F padding, Wg|W1 interleave) ----
    x2d = hidden_states.reshape(M, H).astype(compute_dtype)
    if M_pad != M:
        x2d = jnp.pad(x2d, ((0, M_pad - M), (0, 0)))

    df = F_pad - F
    wg_p = jnp.pad(wg, ((0, 0), (0, df))) if df else wg
    w1_p = jnp.pad(w1, ((0, 0), (0, df))) if df else w1
    bg_p = jnp.pad(bg, ((0, df),)) if df else bg
    b1_p = jnp.pad(b1, ((0, df),)) if df else b1
    w2_p = jnp.pad(w2, ((0, df), (0, 0))) if df else w2

    # Interleave per F-block so block f of width 2*tf is [Wg_f | W1_f].
    wcat = jnp.concatenate(
        [wg_p.reshape(H, n_f, tf), w1_p.reshape(H, n_f, tf)],
        axis=2).reshape(H, 2 * F_pad).astype(compute_dtype)
    bcat = jnp.concatenate(
        [bg_p.reshape(n_f, tf), b1_p.reshape(n_f, tf)],
        axis=1).reshape(1, 2 * F_pad).astype(jnp.float32)
    w2c = w2_p.astype(compute_dtype)
    b22 = b2.reshape(1, H).astype(jnp.float32)

    grid = (M_pad // tm, n_f)
    n_m = grid[0]

    cost = pl.CostEstimate(
        flops=6 * M_pad * H * F_pad,           # gate + up + down matmuls
        transcendentals=M_pad * F_pad,         # activation on the gate
        bytes_accessed=(in_db * M_pad * H                      # x (once)
                        + n_m * in_db * 3 * H * F_pad          # weights per token tile
                        + n_m * 4 * (2 * F_pad + H)            # biases per token tile
                        + out_db * M_pad * H),                 # output
    )

    kernel = functools.partial(_gated_ffn_kernel, tf=tf, n_f=n_f, act=act)
    scratch = [pltpu.VMEM((tm, H), jnp.float32)] if n_f > 1 else []

    out2d = pl.pallas_call(
        kernel,
        out_shape=jax.ShapeDtypeStruct((M_pad, H), out_dtype),
        grid_spec=pltpu.PrefetchScalarGridSpec(
            num_scalar_prefetch=0,
            grid=grid,
            in_specs=[
                pl.BlockSpec((tm, H), lambda i, f: (i, 0)),       # x tile
                pl.BlockSpec((H, 2 * tf), lambda i, f: (0, f)),   # [Wg|W1] slice
                pl.BlockSpec((1, 2 * tf), lambda i, f: (0, f)),   # [bg|b1] slice
                pl.BlockSpec((tf, H), lambda i, f: (f, 0)),       # W2 slice
                pl.BlockSpec((1, H), lambda i, f: (0, 0)),        # b2
            ],
            out_specs=pl.BlockSpec((tm, H), lambda i, f: (i, 0)),
            scratch_shapes=scratch,
        ),
        compiler_params=pltpu.CompilerParams(
            dimension_semantics=("parallel", "arbitrary"),
            vmem_limit_bytes=vmem_limit,
        ),
        cost_estimate=cost,
    )(x2d, wcat, bcat, w2c, b22)

    return out2d[:M].reshape(*lead, H)


def _reference(x, wg, bg, w1, b1, w2, b2, hidden_act="silu"):
    act = _ACT[hidden_act]
    gate = act(x @ wg + bg)
    up = x @ w1 + b1
    return (gate * up) @ w2 + b2


def _make_params(key, hidden_size, feedforward_size):
    k_wg, k_bg, k_w1, k_b1, k_w2, k_b2 = jax.random.split(key, 6)

    def init_w(k, shape, fan_in):
        bound = 1.0 / (fan_in ** 0.5)
        return jax.random.uniform(k, shape, jnp.float32, -bound, bound)

    wg = init_w(k_wg, (hidden_size, feedforward_size), hidden_size)
    bg = init_w(k_bg, (feedforward_size,), hidden_size)
    w1 = init_w(k_w1, (hidden_size, feedforward_size), hidden_size)
    b1 = init_w(k_b1, (feedforward_size,), hidden_size)
    w2 = init_w(k_w2, (feedforward_size, hidden_size), feedforward_size)
    b2 = init_w(k_b2, (hidden_size,), feedforward_size)
    return wg, bg, w1, b1, w2, b2


if __name__ == "__main__":
    key = jax.random.PRNGKey(0)

    # --- Test 1: small shapes, single F step (no scratch), F padded 64->128,
    #     exact f32 path. ---
    batch, seq, hidden_size, feedforward_size = 2, 8, 32, 64
    k_x, k_p, k_rest = jax.random.split(key, 3)
    x = jax.random.normal(k_x, (batch, seq, hidden_size), dtype=jnp.float32)
    params = _make_params(k_p, hidden_size, feedforward_size)

    out = parallel_gated_feed_forward(x, *params)
    out = jax.block_until_ready(out)
    ref = _reference(x, *params)
    assert out.shape == (batch, seq, hidden_size)
    assert jnp.allclose(out, ref, atol=2e-4, rtol=2e-4), "mismatch vs reference"

    # --- Test 2: multi-tile grid (token padding + 3-step F accumulation). ---
    batch2, seq2, hidden2, ff2 = 2, 13, 128, 384   # 26 tokens -> padded to 32
    k_x2, k_p2, k_rest2 = jax.random.split(k_rest, 3)
    x2 = jax.random.normal(k_x2, (batch2, seq2, hidden2), dtype=jnp.float32)
    params2 = _make_params(k_p2, hidden2, ff2)

    out2 = parallel_gated_feed_forward(x2, *params2, token_tile=16, f_tile=128)
    out2 = jax.block_until_ready(out2)
    ref2 = _reference(x2, *params2)
    assert out2.shape == (batch2, seq2, hidden2)
    assert jnp.allclose(out2, ref2, atol=2e-4, rtol=2e-4), "mismatch (tiled path)"

    # --- Test 3: bf16 MXU path for an f32 model + gelu activation. ---
    batch3, seq3, hidden3, ff3 = 2, 16, 64, 256
    k_x3, k_p3 = jax.random.split(k_rest2)
    x3 = jax.random.normal(k_x3, (batch3, seq3, hidden3), dtype=jnp.float32)
    params3 = _make_params(k_p3, hidden3, ff3)

    out3 = parallel_gated_feed_forward(x3, *params3, use_bf16_matmul=True,
                                       hidden_act="gelu")
    out3 = jax.block_until_ready(out3)
    ref3 = _reference(x3, *params3, hidden_act="gelu")
    assert out3.shape == (batch3, seq3, hidden3)
    assert jnp.allclose(out3, ref3, atol=5e-2, rtol=5e-2), "mismatch (bf16 path)"

    print("KERNEL_OK")
</pallas_src>

<mosaic_0001>
module attributes {stable_mosaic.version = 11 : i64} {
  func.func @_gated_ffn_kernel(%arg0: i32, %arg1: i32, %arg2: memref<16x32xf32, #tpu.memory_space<vmem>>, %arg3: memref<32x256xf32, #tpu.memory_space<vmem>>, %arg4: memref<1x256xf32, #tpu.memory_space<vmem>>, %arg5: memref<128x32xf32, #tpu.memory_space<vmem>>, %arg6: memref<1x32xf32, #tpu.memory_space<vmem>>, %arg7: memref<16x32xf32, #tpu.memory_space<vmem>>) attributes {dimension_semantics = [#tpu.dimension_semantics<parallel>, #tpu.dimension_semantics<arbitrary>], iteration_bounds = array<i64: 1, 1>, scalar_prefetch = 0 : i64, scratch_operands = 0 : i64, tpu.core_type = #tpu.core_type<tc>, window_params = [{transform_indices = @transform_0, window_bounds = array<i64: 16, 32>}, {transform_indices = @transform_1, window_bounds = array<i64: 32, 256>}, {transform_indices = @transform_2, window_bounds = array<i64: 1, 256>}, {transform_indices = @transform_3, window_bounds = array<i64: 128, 32>}, {pipeline_mode = #tpu.pipeline_mode<synchronous>, transform_indices = @transform_4, window_bounds = array<i64: 1, 32>}, {transform_indices = @transform_5, window_bounds = array<i64: 16, 32>}]} {
    %c0 = arith.constant 0 : index
    %c0_0 = arith.constant 0 : index
    %0 = vector.load %arg2[%c0, %c0_0] : memref<16x32xf32, #tpu.memory_space<vmem>>, vector<16x32xf32>
    %c0_1 = arith.constant 0 : index
    %c0_2 = arith.constant 0 : index
    %1 = vector.load %arg3[%c0_1, %c0_2] : memref<32x256xf32, #tpu.memory_space<vmem>>, vector<32x256xf32>
    %cst = arith.constant dense<0.000000e+00> : vector<16x256xf32>
    %2 = tpu.matmul %0, %1, %cst {dimension_numbers = #tpu.dot_dimension_numbers<[1], [0], [0], [1], [0, 0, 1, 1], [], []>} : vector<16x32xf32>, vector<32x256xf32>, vector<16x256xf32> -> vector<16x256xf32>
    %c0_3 = arith.constant 0 : index
    %c0_4 = arith.constant 0 : index
    %3 = vector.load %arg4[%c0_3, %c0_4] : memref<1x256xf32, #tpu.memory_space<vmem>>, vector<1x256xf32>
    %4 = vector.broadcast %3 : vector<1x256xf32> to vector<16x256xf32>
    %5 = arith.addf %2, %4 : vector<16x256xf32>
    %6 = vector.extract_strided_slice %5 {offsets = [0, 0], sizes = [16, 128], strides = [1, 1]} : vector<16x256xf32> to vector<16x128xf32>
    %7 = vector.extract_strided_slice %5 {offsets = [0, 128], sizes = [16, 128], strides = [1, 1]} : vector<16x256xf32> to vector<16x128xf32>
    %8 = arith.negf %6 : vector<16x128xf32>
    %9 = math.exp %8 : vector<16x128xf32>
    %cst_5 = arith.constant 1.000000e+00 : f32
    %10 = vector.broadcast %cst_5 : f32 to vector<16x128xf32>
    %11 = arith.addf %10, %9 : vector<16x128xf32>
    %12 = arith.divf %10, %11 : vector<16x128xf32>
    %13 = arith.mulf %6, %12 : vector<16x128xf32>
    %14 = arith.mulf %13, %7 : vector<16x128xf32>
    %c0_6 = arith.constant 0 : index
    %c0_7 = arith.constant 0 : index
    %15 = vector.load %arg5[%c0_6, %c0_7] : memref<128x32xf32, #tpu.memory_space<vmem>>, vector<128x32xf32>
    %cst_8 = arith.constant dense<0.000000e+00> : vector<16x32xf32>
    %16 = tpu.matmul %14, %15, %cst_8 {dimension_numbers = #tpu.dot_dimension_numbers<[1], [0], [0], [1], [0, 0, 1, 1], [], []>} : vector<16x128xf32>, vector<128x32xf32>, vector<16x32xf32> -> vector<16x32xf32>
    %c0_9 = arith.constant 0 : index
    %c0_10 = arith.constant 0 : index
    %17 = vector.load %arg6[%c0_9, %c0_10] : memref<1x32xf32, #tpu.memory_space<vmem>>, vector<1x32xf32>
    %18 = vector.broadcast %17 : vector<1x32xf32> to vector<16x32xf32>
    %19 = arith.addf %16, %18 : vector<16x32xf32>
    %c0_11 = arith.constant 0 : index
    %c0_12 = arith.constant 0 : index
    %20 = vector.load %arg7[%c0_11, %c0_12] : memref<16x32xf32, #tpu.memory_space<vmem>>, vector<16x32xf32>
    tpu.vector_store %arg7[%c0_11, %c0_12], %19 {strides = array<i32>} : memref<16x32xf32, #tpu.memory_space<vmem>>, vector<16x32xf32>,
    return
  }
  func.func @transform_0(%arg0: i32, %arg1: i32) -> (i32, i32) {
    %c0_i32 = arith.constant 0 : i32
    %c0_i32_0 = arith.constant 0 : i32
    return %arg0, %c0_i32 : i32, i32
  }
  func.func @transform_1(%arg0: i32, %arg1: i32) -> (i32, i32) {
    %c0_i32 = arith.constant 0 : i32
    %c0_i32_0 = arith.constant 0 : i32
    return %c0_i32, %arg1 : i32, i32
  }
  func.func @transform_2(%arg0: i32, %arg1: i32) -> (i32, i32) {
    %c0_i32 = arith.constant 0 : i32
    %c0_i32_0 = arith.constant 0 : i32
    return %c0_i32, %arg1 : i32, i32
  }
  func.func @transform_3(%arg0: i32, %arg1: i32) -> (i32, i32) {
    %c0_i32 = arith.constant 0 : i32
    %c0_i32_0 = arith.constant 0 : i32
    return %arg1, %c0_i32 : i32, i32
  }
  func.func @transform_4(%arg0: i32, %arg1: i32) -> (i32, i32) {
    %c0_i32 = arith.constant 0 : i32
    %c0_i32_0 = arith.constant 0 : i32
    %c0_i32_1 = arith.constant 0 : i32
    return %c0_i32, %c0_i32_0 : i32, i32
  }
  func.func @transform_5(%arg0: i32, %arg1: i32) -> (i32, i32) {
    %c0_i32 = arith.constant 0 : i32
    %c0_i32_0 = arith.constant 0 : i32
    return %arg0, %c0_i32 : i32, i32
  }
}

</mosaic_0001>

<llo_original>
// kernel: parallel_gated_feed_forward.1
$region0: #{parallel_gated_feed_forward.1}
  #allocation0 [shape = 'u32[]', space=smem, size = 0x4, offset = 0x4, fixed_abs, tag = 'smem constant byte address 0x4 - core index']
  #allocation1 [shape = 'u32[144,128]{1,0:T(1,128)}', space=vmem, size = 0x12000, scoped, tag = 'internal scratch']
  %s0 = inlined_call_operand.vmem [shape: f32[16,32], index: 0, kind: input, shape index: {}]
  %s1 = inlined_call_operand.vmem [shape: f32[32,256], index: 1, kind: input, shape index: {}]
  %s2 = inlined_call_operand.vmem [shape: f32[1,256], index: 2, kind: input, shape index: {}]
  %s3 = inlined_call_operand.vmem [shape: f32[128,32], index: 3, kind: input, shape index: {}]
  %s4 = inlined_call_operand.vmem [shape: f32[1,32], index: 4, kind: input, shape index: {}]
  %s5 = inlined_call_operand.hbm [shape: f32[16,32], index: 5, kind: output, shape index: {}]
  %s6 = sld [smem:[#allocation0]]
  $region30: #{parallel_gated_feed_forward.1} parent=0
    _
  %s8 = ssub.s32 1, %s6
  %s9 = scalar_select 0, %s8, %s6
  $region1: #{parallel_gated_feed_forward.1} parent=0
    #allocation2 [shape = 'u8[8192]{0}', space=vmem, size = 0x2000, scoped, tag = 'output window, operand 0, single buffered']
    #allocation3 [shape = 's32[1]{0}', space=sflag, size = 0x4, scoped, tag = 'scoped memory for parallel_gated_feed_forward.1']
    %10 = vsyncpa [#allocation3], 0
    // Predicated region
    $region2: #{parallel_gated_feed_forward.1} parent=1 // pred_check
      _
    $region3: #{parallel_gated_feed_forward.1} parent=1 // pred_check_branch
      %12 = sbr.rel (0) target = $region5
    $region4: #{parallel_gated_feed_forward.1} parent=1 // pred_region
      _
    $region5: #{parallel_gated_feed_forward.1} parent=1 // pred_fallthru
      _
    // Predicated region
    $region6: #{parallel_gated_feed_forward.1} parent=1 // pred_check
      _
    $region7: #{parallel_gated_feed_forward.1} parent=1 // pred_check_branch
      %14 = sbr.rel (0) target = $region9
    $region8: #{parallel_gated_feed_forward.1} parent=1 // pred_region
      _
    $region9: #{parallel_gated_feed_forward.1} parent=1 // pred_fallthru
      _
    // Predicated region
    $region10: #{parallel_gated_feed_forward.1} parent=1 // pred_check
      _
    $region11: #{parallel_gated_feed_forward.1} parent=1 // pred_check_branch
      %16 = sbr.rel (0) target = $region13
    $region12: #{parallel_gated_feed_forward.1} parent=1 // pred_region
      _
    $region13: #{parallel_gated_feed_forward.1} parent=1 // pred_fallthru
      _
    // Predicated region
    $region14: #{parallel_gated_feed_forward.1} parent=1 // pred_check
      _
    $region15: #{parallel_gated_feed_forward.1} parent=1 // pred_check_branch
      %18 = sbr.rel (0) target = $region17
    $region16: #{parallel_gated_feed_forward.1} parent=1 // pred_region
      _
    $region17: #{parallel_gated_feed_forward.1} parent=1 // pred_fallthru
      _
    // Predicated region
    $region18: #{parallel_gated_feed_forward.1} parent=1 // pred_check
      _
    $region19: #{parallel_gated_feed_forward.1} parent=1 // pred_check_branch
      %20 = sbr.rel (0) target = $region21
    $region20: #{parallel_gated_feed_forward.1} parent=1 // pred_region
      _
    $region21: #{parallel_gated_feed_forward.1} parent=1 // pred_fallthru
      _
    %v21 = vld [vmem:[%s0] sm:$0xff]
    %v22 = vld [vmem:[%s0 + $0x8] sm:$0xff]
    %v23 = vld [vmem:[%s1] sm:$0xff]
    %v24 = vld [vmem:[%s1 + $0x8] sm:$0xff]
    %v25 = vld [vmem:[%s1 + $0x10] sm:$0xff]
    %v26 = vld [vmem:[%s1 + $0x18] sm:$0xff]
    %v27 = vld [vmem:[%s1 + $0x20] sm:$0xff]
    %v28 = vld [vmem:[%s1 + $0x28] sm:$0xff]
    %v29 = vld [vmem:[%s1 + $0x30] sm:$0xff]
    %v30 = vld [vmem:[%s1 + $0x38] sm:$0xff]
    %v31 = vld [vmem:[%s2] sm:$0x3]
    %v33 = vlaneseq
    %v34 = vshrl.u32 %v33, 7
    %v35 = vsub.s32 0, %v34
    %v36 = vrot.slane %v31, %v35
    %v37 = vlaneseq
    %v38 = vshrl.u32 %v37, 7
    %v39 = vsub.s32 1, %v38
    %v40 = vrot.slane %v31, %v39
    %vm43 = vcmask 261120
    %v45 = vsel %vm43, %v21, 0
    %v48 = vsel %vm43, %v22, 0
    %50 = vmatprep.subr.mxu0 %v24
    %51 = vmatpush1.msra.mxu0 %v23
    %52 = vmatprep.subr.mxu0 %v26
    %53 = vmatpush1.msra.mxu0 %v25
    %54 = vmatprep.subr.mxu0 %v28
    %55 = vmatpush1.msra.mxu0 %v27
    %56 = vmatprep.subr.mxu0 %v30
    %57 = vmatpush1.msra.mxu0 %v29
    %58 = vmatprep.subr.mxu0 0.0
    %59 = vmatpush1.msra.mxu0 0.0
    %60 = vmatprep.subr.mxu0 0.0
    %61 = vmatpush1.msra.mxu0 0.0
    %62 = vmatprep.subr.mxu0 0.0
    %63 = vmatpush1.msra.mxu0 0.0
    %64 = vmatprep.subr.mxu0 0.0
    %65 = vmatpush1.msra.mxu0 0.0
    %66 = vmatprep.subr.mxu0 0.0
    %67 = vmatpush1.msra.mxu0 0.0
    %68 = vmatprep.subr.mxu0 0.0
    %69 = vmatpush1.msra.mxu0 0.0
    %70 = vmatprep.subr.mxu0 0.0
    %71 = vmatpush1.msra.mxu0 0.0
    %72 = vmatprep.subr.mxu0 0.0
    %73 = vmatpush1.msra.mxu0 0.0
    %74 = vmatprep.subr.mxu0 0.0
    %75 = vmatpush1.msra.mxu0 0.0
    %76 = vmatprep.subr.mxu0 0.0
    %77 = vmatpush1.msra.mxu0 0.0
    %78 = vmatprep.subr.mxu0 0.0
    %79 = vmatpush1.msra.mxu0 0.0
    %80 = vmatprep.subr.mxu0 0.0
    %81 = vmatpush1.msra.mxu0 0.0
    %82 = vmatprep.subr.mxu0 0.0
    %83 = vmatpush1.msra.mxu0 0.0
    %84 = vmatprep.subr.mxu0 0.0
    %85 = vmatpush1.msra.mxu0 0.0
    %86 = vmatprep.subr.mxu0 0.0
    %87 = vmatpush1.msra.mxu0 0.0
    %88 = vmatprep.subr.mxu0 0.0
    %89 = vmatpush1.msra.mxu0 0.0
    %90 = vmatprep.subr.mxu0 0.0
    %91 = vmatpush1.msra.mxu0 0.0
    %92 = vmatprep.subr.mxu0 0.0
    %93 = vmatpush1.msra.mxu0 0.0
    %94 = vmatprep.subr.mxu0 0.0
    %95 = vmatpush1.msra.mxu0 0.0
    %96 = vmatprep.subr.mxu0 0.0
    %97 = vmatpush1.msra.mxu0 0.0
    %98 = vmatprep.subr.mxu0 0.0
    %99 = vmatpush1.msra.mxu0 0.0
    %100 = vmatprep.subr.mxu0 0.0
    %101 = vmatpush1.msra.mxu0 0.0
    %102 = vmatprep.subr.mxu0 0.0
    %103 = vmatpush1.msra.mxu0 0.0
    %104 = vmatprep.subr.mxu0 0.0
    %105 = vmatpush1.msra.mxu0 0.0
    %106 = vmatprep.subr.mxu0 0.0
    %107 = vmatpush1.msra.mxu0 0.0
    %108 = vmatprep.subr.mxu0 0.0
    %109 = vmatpush1.msra.mxu0 0.0
    %110 = vmatprep.subr.mxu0 0.0
    %111 = vmatpush1.msra.mxu0 0.0
    %112 = vmatprep.subr.mxu0 0.0
    %113 = vmatpush1.msra.mxu0 0.0
    %114 = vmatprep.mubr.f32.mxu0 0.0
    %115 = vmatmul.mubr.f32.gmra.mrb[0].mxu0 %v45
    %v116 = vpop.f32.mrb[0].mxu0
    %v117 = vadd.f32 %v36, %v116
    %v118 = vpop.f32.mrb[0].mxu0
    %v119 = vadd.f32 %v40, %v118
    %120 = vmatprep.mubr.f32.mxu0 0.0
    %121 = vmatmul.mubr.f32.gmra.mrb[0].mxu0 %v48
    %v122 = vpop.f32.mrb[0].mxu0
    %v123 = vadd.f32 %v36, %v122
    %v124 = vpop.f32.mrb[0].mxu0
    %v125 = vadd.f32 %v40, %v124
    %126 = vdwg.mxu0
    %v127 = vxor.u32 %v117, 2147483648
    %v128 = vxor.u32 %v123, 2147483648
    %v129 = vmul.f32 %v127, 1.442695
    %v130 = vpow.pop %v129
    %v131 = vmul.f32 %v128, 1.442695
    %v132 = vpow.pop %v131
    %v133 = vadd.f32 %v130, 1.0
    %v134 = vadd.f32 %v132, 1.0
    %v135 = vrcp.pop %v133
    %v136 = vmul.f32 1.0, %v135
    %v137 = vrcp.pop %v134
    %v138 = vmul.f32 1.0, %v137
    %v139 = vmul.f32 %v117, %v136
    %v140 = vmul.f32 %v123, %v138
    %v141 = vmul.f32 %v139, %v119
    %v142 = vmul.f32 %v140, %v125
    %v143 = vld [vmem:[%s3] sm:$0xff]
    %v144 = vld [vmem:[%s3 + $0x8] sm:$0xff]
    %v145 = vld [vmem:[%s3 + $0x10] sm:$0xff]
    %v146 = vld [vmem:[%s3 + $0x18] sm:$0xff]
    %v147 = vld [vmem:[%s3 + $0x20] sm:$0xff]
    %v148 = vld [vmem:[%s3 + $0x28] sm:$0xff]
    %v149 = vld [vmem:[%s3 + $0x30] sm:$0xff]
    %v150 = vld [vmem:[%s3 + $0x38] sm:$0xff]
    %v151 = vld [vmem:[%s3 + $0x40] sm:$0xff]
    %v152 = vld [vmem:[%s3 + $0x48] sm:$0xff]
    %v153 = vld [vmem:[%s3 + $0x50] sm:$0xff]
    %v154 = vld [vmem:[%s3 + $0x58] sm:$0xff]
    %v155 = vld [vmem:[%s3 + $0x60] sm:$0xff]
    %v156 = vld [vmem:[%s3 + $0x68] sm:$0xff]
    %v157 = vld [vmem:[%s3 + $0x70] sm:$0xff]
    %v158 = vld [vmem:[%s3 + $0x78] sm:$0xff]
    %v159 = vld [vmem:[%s4] sm:$0x1]
    %v161 = vlaneseq
    %v162 = vshrl.u32 %v161, 7
    %v163 = vsub.s32 0, %v162
    %v164 = vrot.slane %v159, %v163
    %166 = vmatprep.subr.mxu0 0.0
    %167 = vmatpush1.msra.mxu0 %v143
    %168 = vmatprep.subr.mxu0 0.0
    %169 = vmatpush1.msra.mxu0 %v144
    %170 = vmatprep.subr.mxu0 0.0
    %171 = vmatpush1.msra.mxu0 %v145
    %172 = vmatprep.subr.mxu0 0.0
    %173 = vmatpush1.msra.mxu0 %v146
    %174 = vmatprep.subr.mxu0 0.0
    %175 = vmatpush1.msra.mxu0 %v147
    %176 = vmatprep.subr.mxu0 0.0
    %177 = vmatpush1.msra.mxu0 %v148
    %178 = vmatprep.subr.mxu0 0.0
    %179 = vmatpush1.msra.mxu0 %v149
    %180 = vmatprep.subr.mxu0 0.0
    %181 = vmatpush1.msra.mxu0 %v150
    %182 = vmatprep.subr.mxu0 0.0
    %183 = vmatpush1.msra.mxu0 %v151
    %184 = vmatprep.subr.mxu0 0.0
    %185 = vmatpush1.msra.mxu0 %v152
    %186 = vmatprep.subr.mxu0 0.0
    %187 = vmatpush1.msra.mxu0 %v153
    %188 = vmatprep.subr.mxu0 0.0
    %189 = vmatpush1.msra.mxu0 %v154
    %190 = vmatprep.subr.mxu0 0.0
    %191 = vmatpush1.msra.mxu0 %v155
    %192 = vmatprep.subr.mxu0 0.0
    %193 = vmatpush1.msra.mxu0 %v156
    %194 = vmatprep.subr.mxu0 0.0
    %195 = vmatpush1.msra.mxu0 %v157
    %196 = vmatprep.subr.mxu0 0.0
    %197 = vmatpush1.msra.mxu0 %v158
    %198 = vmatprep.subr.mxu0 0.0
    %199 = vmatpush1.msra.mxu0 0.0
    %200 = vmatprep.subr.mxu0 0.0
    %201 = vmatpush1.msra.mxu0 0.0
    %202 = vmatprep.subr.mxu0 0.0
    %203 = vmatpush1.msra.mxu0 0.0
    %204 = vmatprep.subr.mxu0 0.0
    %205 = vmatpush1.msra.mxu0 0.0
    %206 = vmatprep.subr.mxu0 0.0
    %207 = vmatpush1.msra.mxu0 0.0
    %208 = vmatprep.subr.mxu0 0.0
    %209 = vmatpush1.msra.mxu0 0.0
    %210 = vmatprep.subr.mxu0 0.0
    %211 = vmatpush1.msra.mxu0 0.0
    %212 = vmatprep.subr.mxu0 0.0
    %213 = vmatpush1.msra.mxu0 0.0
    %214 = vmatprep.subr.mxu0 0.0
    %215 = vmatpush1.msra.mxu0 0.0
    %216 = vmatprep.subr.mxu0 0.0
    %217 = vmatpush1.msra.mxu0 0.0
    %218 = vmatprep.subr.mxu0 0.0
    %219 = vmatpush1.msra.mxu0 0.0
    %220 = vmatprep.subr.mxu0 0.0
    %221 = vmatpush1.msra.mxu0 0.0
    %222 = vmatprep.subr.mxu0 0.0
    %223 = vmatpush1.msra.mxu0 0.0
    %224 = vmatprep.subr.mxu0 0.0
    %225 = vmatpush1.msra.mxu0 0.0
    %226 = vmatprep.subr.mxu0 0.0
    %227 = vmatpush1.msra.mxu0 0.0
    %228 = vmatprep.subr.mxu0 0.0
    %229 = vmatpush1.msra.mxu0 0.0
    %230 = vmatprep.mubr.f32.mxu0 0.0
    %231 = vmatmul.mubr.f32.gmra.mrb[0].mxu0 %v141
    %v232 = vpop.f32.mrb[0].mxu0
    %v233 = vadd.f32 %v164, %v232
    %v234 = vpop.f32.mrb[0].mxu0
    %235 = vmatprep.mubr.f32.mxu0 0.0
    %236 = vmatmul.mubr.f32.gmra.mrb[0].mxu0 %v142
    %v237 = vpop.f32.mrb[0].mxu0
    %v238 = vadd.f32 %v164, %v237
    %v239 = vpop.f32.mrb[0].mxu0
    %240 = vdwg.mxu0
    %241 = vst.msk [vmem:[#allocation2] sm:$0xff] %vm43, %v233
    %242 = vst.msk [vmem:[#allocation2 + $0x8] sm:$0xff] %vm43, %v238
    // Predicated region
    $region22: #{parallel_gated_feed_forward.1} parent=1 // pred_check
      _
    $region23: #{parallel_gated_feed_forward.1} parent=1 // pred_check_branch
      %244 = sbr.rel (0) target = $region25
    $region24: #{parallel_gated_feed_forward.1} parent=1 // pred_region
      %s246 = ssub.s32 256, 256
      %247 = vsyncadd [#allocation3], %s246
      %s248 = sshll.u32 [#allocation2], 4
      %s249 = int_to_ptr.vmem [resolvable:$true] %s248
      %254 = dma.vmem_to_hbm [thread:$0]  %s249, 256, %s5, [#allocation3], 128, 128, 8
    $region25: #{parallel_gated_feed_forward.1} parent=1 // pred_fallthru
      _
    // Predicated region
    $region26: #{parallel_gated_feed_forward.1} parent=1 // pred_check
      _
    $region27: #{parallel_gated_feed_forward.1} parent=1 // pred_check_branch
      %256 = sbr.rel (0) target = $region29
    $region28: #{parallel_gated_feed_forward.1} parent=1 // pred_region
      %257 = dma.done [#allocation3], 256
    $region29: #{parallel_gated_feed_forward.1} parent=1 // pred_fallthru
      _
    %258 = vsyncpa [#allocation3], 1

</llo_original>
